<compile_context>
chip_gen: v6e
topology: v6e:2x2x1
jax: 0.10.0
libtpu: 0.0.40
codegen_flags: <defaults>
</compile_context>

<pallas_src>
import functools

import jax
import jax.numpy as jnp
import numpy as np
from jax.experimental import pallas as pl
from jax.experimental.pallas import tpu as pltpu


def _round_up(v, m):
    return ((v + m - 1) // m) * m


# ----------------------------------------------------------------------------
# Pallas kernels
# ----------------------------------------------------------------------------
def _node_proj_kernel(x_ref, w_ref, al_ref, ar_ref, xp_ref, al_out_ref, ar_out_ref):
    """Per-node projection + per-head attention scalars for one TATConv layer.

    x_ref  : (TN, Fx)   node features                      (matmul dtype)
    w_ref  : (Fx, HC)   lin_l weight, node-feature part    (matmul dtype)
    al_ref : (HC, H)    block-diagonal att_l score matrix  (f32)
    ar_ref : (HC, H)    block-diagonal att_r score matrix  (f32)
    xp_ref : (TN, HC)   x @ W_x                            (f32, lane-dense)
    al_out : (TN, H)    per-node att_l contribution
    ar_out : (TN, H)    per-node att_r contribution
    """
    xp = jnp.dot(x_ref[...], w_ref[...], preferred_element_type=jnp.float32)
    xp_ref[...] = xp
    # Narrow (TN, H) outputs are acceptable here: N << E, not the hot kernel.
    al_out_ref[...] = jnp.dot(xp, al_ref[...], preferred_element_type=jnp.float32)
    ar_out_ref[...] = jnp.dot(xp, ar_ref[...], preferred_element_type=jnp.float32)


def _edge_msg_kernel(te_ref, xp_ref, wt_ref, feat_ref):
    """Per-edge message payload: feat_j = x_proj[src] + time_encoding @ W_t.

    te_ref  : (TE, Td)  harmonic time encodings            (matmul dtype)
    xp_ref  : (TE, HC)  gathered per-source projections    (f32)
    wt_ref  : (Td, HC)  lin_l weight, time-encoding part   (matmul dtype)
    feat_ref: (TE, HC)  message payload (lane-dense, f32)
    """
    te_proj = jnp.dot(te_ref[...], wt_ref[...], preferred_element_type=jnp.float32)
    feat_ref[...] = xp_ref[...] + te_proj


def _mlp_head_kernel(x_ref, w1_ref, b1_ref, w2_ref, b2_ref, o_ref, *, negative_slope):
    """Fused feed-forward head: Linear -> LeakyReLU -> Linear."""
    h = jnp.dot(x_ref[...], w1_ref[...], preferred_element_type=jnp.float32) + b1_ref[...]
    h = jnp.where(h > 0, h, negative_slope * h)
    o_ref[...] = jnp.dot(h, w2_ref[...], preferred_element_type=jnp.float32) + b2_ref[...]


# ----------------------------------------------------------------------------
# Pallas wrappers
# ----------------------------------------------------------------------------
def _node_projection(x, w_x, a_l_bd, a_r_bd, *, matmul_dtype, block_n=1024):
    n, fx = x.shape
    hc = w_x.shape[1]
    h = a_l_bd.shape[1]
    tile_n = min(block_n, _round_up(n, 16))       # 16-row sublane multiple (bf16 tiles)
    n_pad = _round_up(n, tile_n)
    xm = x.astype(matmul_dtype)
    if n_pad != n:
        xm = jnp.pad(xm, ((0, n_pad - n), (0, 0)))
    wm = w_x.astype(matmul_dtype)

    mm_bytes = jnp.dtype(matmul_dtype).itemsize
    flops = int(2 * n_pad * fx * hc + 2 * 2 * n_pad * hc * h)
    bytes_accessed = int(mm_bytes * (n_pad * fx + fx * hc)
                         + 4 * (2 * hc * h + n_pad * hc + 2 * n_pad * h))

    xp, al, ar = pl.pallas_call(
        _node_proj_kernel,
        out_shape=(jax.ShapeDtypeStruct((n_pad, hc), jnp.float32),
                   jax.ShapeDtypeStruct((n_pad, h), jnp.float32),
                   jax.ShapeDtypeStruct((n_pad, h), jnp.float32)),
        grid=(n_pad // tile_n,),
        in_specs=[
            pl.BlockSpec((tile_n, fx), lambda i: (i, 0)),
            pl.BlockSpec((fx, hc), lambda i: (0, 0)),
            pl.BlockSpec((hc, h), lambda i: (0, 0)),
            pl.BlockSpec((hc, h), lambda i: (0, 0)),
        ],
        out_specs=(
            pl.BlockSpec((tile_n, hc), lambda i: (i, 0)),
            pl.BlockSpec((tile_n, h), lambda i: (i, 0)),
            pl.BlockSpec((tile_n, h), lambda i: (i, 0)),
        ),
        compiler_params=pltpu.CompilerParams(dimension_semantics=("parallel",)),
        cost_estimate=pl.CostEstimate(flops=flops, transcendentals=0,
                                      bytes_accessed=bytes_accessed),
    )(xm, wm, a_l_bd, a_r_bd)
    return xp[:n], al[:n], ar[:n]


def _edge_projection(te, xj_proj, w_t, *, matmul_dtype, block_e=1024):
    e, td = te.shape
    hc = w_t.shape[1]
    tile_e = min(block_e, _round_up(e, 16))
    e_pad = _round_up(e, tile_e)
    tem = te.astype(matmul_dtype)
    xp = xj_proj
    if e_pad != e:
        pad = ((0, e_pad - e), (0, 0))
        tem = jnp.pad(tem, pad)
        xp = jnp.pad(xp, pad)
    wm = w_t.astype(matmul_dtype)

    mm_bytes = jnp.dtype(matmul_dtype).itemsize
    flops = int(2 * e_pad * td * hc)
    bytes_accessed = int(mm_bytes * (e_pad * td + td * hc) + 4 * 2 * e_pad * hc)

    feat = pl.pallas_call(
        _edge_msg_kernel,
        out_shape=jax.ShapeDtypeStruct((e_pad, hc), jnp.float32),
        grid=(e_pad // tile_e,),
        in_specs=[
            pl.BlockSpec((tile_e, td), lambda i: (i, 0)),
            pl.BlockSpec((tile_e, hc), lambda i: (i, 0)),
            pl.BlockSpec((td, hc), lambda i: (0, 0)),
        ],
        out_specs=pl.BlockSpec((tile_e, hc), lambda i: (i, 0)),
        compiler_params=pltpu.CompilerParams(dimension_semantics=("parallel",)),
        cost_estimate=pl.CostEstimate(flops=flops, transcendentals=0,
                                      bytes_accessed=bytes_accessed),
    )(tem, xp, wm)
    return feat[:e]


def _mlp_head(ff_in, w1_t, b1, w2_t, b2, *, negative_slope):
    g = ff_in.shape[0]
    o = w2_t.shape[1]
    vmem = pl.BlockSpec(memory_space=pltpu.MemorySpace.VMEM)
    return pl.pallas_call(
        functools.partial(_mlp_head_kernel, negative_slope=negative_slope),
        out_shape=jax.ShapeDtypeStruct((g, o), jnp.float32),
        in_specs=[vmem] * 5,
        out_specs=vmem,
    )(ff_in, w1_t, b1.reshape(1, -1), w2_t, b2.reshape(1, -1))


# ----------------------------------------------------------------------------
# Model: parameters + forward
# ----------------------------------------------------------------------------
def _block_diag_att(att):
    """att: (1, H, C) -> (H*C, H) so that (feat @ A)[e, h] = sum_c feat[e, h*C+c]*att[0,h,c]."""
    _, h, c = att.shape
    eye = jnp.eye(h, dtype=att.dtype)
    return (att[0][:, :, None] * eye[:, None, :]).reshape(h * c, h)


def init_tatt_params(key, *, in_features, hidden_features, num_layers, time_dim,
                     set_indice_length):
    ks = iter(jax.random.split(key, 4 * num_layers + 8))

    def glorot(k, shape):
        bound = float(np.sqrt(6.0 / (shape[-1] + shape[-2])))
        return jax.random.uniform(k, shape, jnp.float32, -bound, bound)

    layers, configs = [], []
    prev_dim = in_features
    for i in range(num_layers):
        heads = 4 if i < num_layers - 1 else 1
        in_ch = prev_dim + time_dim
        out_ch = hidden_features
        weight = glorot(next(ks), (heads * out_ch, in_ch))          # lin_l.weight (HC, Fin)
        att_l = glorot(next(ks), (1, heads, out_ch))
        att_r = glorot(next(ks), (1, heads, out_ch))
        w_full_t = weight.T                                          # (Fin, HC), once at init
        a_l_bd = _block_diag_att(att_l)                              # (HC, H)
        a_r_bd = _block_diag_att(att_r)
        layers.append({
            "weight": weight, "att_l": att_l, "att_r": att_r,        # raw params (reference)
            "w_x": w_full_t[:prev_dim],                              # (Fx, HC)
            "w_t": w_full_t[prev_dim:],                              # (Td, HC)
            "a_l_bd": a_l_bd, "a_r_bd": a_r_bd,
            "m_l": w_full_t[prev_dim:] @ a_l_bd,                     # (Td, H): time-enc att_l term
            "bias": 0.01 * jax.random.normal(next(ks), (heads * out_ch,), jnp.float32),
        })
        configs.append((heads, out_ch))
        prev_dim = heads * out_ch

    ff_in = 1 + set_indice_length * hidden_features
    params = {
        "layers": layers,
        # HarmonicEncoder parameters
        "basis_freq": jnp.asarray((1.0 / 10.0 ** np.linspace(0, 9, time_dim)).astype(np.float32)),
        "phase": 0.1 * jax.random.normal(next(ks), (time_dim,), jnp.float32),
        # feed_forward head (TATT: Linear(1+L*H, H) -> LeakyReLU -> Linear(H, L))
        "ff_w1": glorot(next(ks), (hidden_features, ff_in)),
        "ff_b1": 0.01 * jax.random.normal(next(ks), (hidden_features,), jnp.float32),
        "ff_w2": glorot(next(ks), (set_indice_length, hidden_features)),
        "ff_b2": 0.01 * jax.random.normal(next(ks), (set_indice_length,), jnp.float32),
    }
    return params, tuple(configs)


def tatt_forward(params, layer_configs, x, edge_index, timestamps, batch_idx,
                 set_indice, num_graphs, timestamp, *, negative_slope=0.2,
                 matmul_dtype=jnp.bfloat16):
    """Pallas-backed equivalent of TATT.forward (eval mode, dropout=0, attention=True)."""
    n = x.shape[0]
    src, dst = edge_index[0], edge_index[1]

    # HarmonicEncoder: cos(ts * basis_freq + phase); zero-encoding row = cos(phase)
    te = jnp.cos(timestamps[:, None] * params["basis_freq"][None, :]
                 + params["phase"][None, :])
    ze_row = jnp.cos(params["phase"])                                # (Td,)

    for lp, (heads, out_ch) in zip(params["layers"], layer_configs):
        hc = heads * out_ch

        # Per-node projection + per-head attention scalars (Pallas, lane-dense out).
        x_proj, alpha_l_node, alpha_r_node = _node_projection(
            x, lp["w_x"], lp["a_l_bd"], lp["a_r_bd"], matmul_dtype=matmul_dtype)

        # Constant zero-encoding contribution to the target-side attention scalar.
        const_r = (ze_row @ lp["w_t"]) @ lp["a_r_bd"]                # (H,), tiny

        # Per-edge message payload feat_j = x_proj[src] + te @ W_t (Pallas).
        xj_proj = jnp.take(x_proj, src, axis=0)                      # data-dependent gather (JAX)
        feat_j = _edge_projection(te, xj_proj, lp["w_t"], matmul_dtype=matmul_dtype)

        # Attention logits: per-node scalars gathered per edge + tiny (E,Td)@(Td,H)
        # time-encoding term; (E, H) elementwise math left to XLA fusion so the hot
        # Pallas kernel emits no lane-sparse / masked stores.
        score = (jnp.take(alpha_l_node, src, axis=0) + te @ lp["m_l"]
                 + jnp.take(alpha_r_node, dst, axis=0) + const_r[None, :])
        score = jnp.where(score > 0, score, negative_slope * score)

        # TODO(synk): segment softmax + weighted scatter-add are data-dependent; fusing
        # them into the edge kernel needs dst-sorted edges + PrefetchScalarGridSpec
        # segment offsets, so they stay in plain JAX here.
        smax = jax.ops.segment_max(score, dst, num_segments=n)
        ex = jnp.exp(score - smax[dst])
        den = jax.ops.segment_sum(ex, dst, num_segments=n)
        alpha = ex / (den[dst] + 1e-16)

        msg = (feat_j.reshape(-1, heads, out_ch) * alpha[:, :, None]).reshape(-1, hc)
        agg = jax.ops.segment_sum(msg, dst, num_segments=n)

        # TATConv bias + TATModel LeakyReLU (dropout p=0 -> identity); plain JAX so
        # XLA fuses it with the segment-sum consumer (no extra kernel launch).
        v = agg + lp["bias"][None, :]
        x = jnp.where(v > 0, v, negative_slope * v)

    # get_mini_batch_embedings + pool (data-dependent gather -> JAX glue)
    num_nodes = jax.ops.segment_sum(jnp.ones((n,), jnp.float32), batch_idx,
                                    num_segments=num_graphs)
    index_bases = jnp.concatenate(
        [jnp.zeros((1,), jnp.int32), jnp.cumsum(num_nodes).astype(jnp.int32)[:-1]])
    set_indice_batch = index_bases[:, None] + set_indice
    merged = x[set_indice_batch].reshape(num_graphs, -1)

    ff_in = jnp.concatenate(
        [jnp.full((num_graphs, 1), timestamp, jnp.float32), merged], axis=1)
    return _mlp_head(ff_in, params["ff_w1"].T, params["ff_b1"],
                     params["ff_w2"].T, params["ff_b2"],
                     negative_slope=negative_slope)


# ----------------------------------------------------------------------------
# Pure-JAX reference (mirrors the PyTorch computation order) for verification
# ----------------------------------------------------------------------------
def _reference_forward(params, layer_configs, x, edge_index, timestamps, batch_idx,
                       set_indice, num_graphs, timestamp, *, negative_slope=0.2):
    n = x.shape[0]
    src, dst = edge_index[0], edge_index[1]
    te = jnp.cos(timestamps[:, None] * params["basis_freq"][None, :]
                 + params["phase"][None, :])
    ze = jnp.cos(jnp.zeros_like(timestamps)[:, None] * params["basis_freq"][None, :]
                 + params["phase"][None, :])
    for lp, (heads, out_ch) in zip(params["layers"], layer_configs):
        xj = jnp.concatenate([x[src], te], axis=1)
        xi = jnp.concatenate([x[dst], ze], axis=1)
        fj = (xj @ lp["weight"].T).reshape(-1, heads, out_ch)
        fi = (xi @ lp["weight"].T).reshape(-1, heads, out_ch)
        a = (fj * lp["att_l"]).sum(-1) + (fi * lp["att_r"]).sum(-1)
        a = jnp.where(a > 0, a, negative_slope * a)
        amax = jax.ops.segment_max(a, dst, num_segments=n)
        ex = jnp.exp(a - amax[dst])
        den = jax.ops.segment_sum(ex, dst, num_segments=n)
        alpha = ex / (den[dst] + 1e-16)
        msg = (fj * alpha[:, :, None]).reshape(-1, heads * out_ch)
        out = jax.ops.segment_sum(msg, dst, num_segments=n) + lp["bias"]
        x = jnp.where(out > 0, out, negative_slope * out)

    num_nodes = jax.ops.segment_sum(jnp.ones((n,), jnp.float32), batch_idx,
                                    num_segments=num_graphs)
    index_bases = jnp.concatenate(
        [jnp.zeros((1,), jnp.int32), jnp.cumsum(num_nodes).astype(jnp.int32)[:-1]])
    merged = x[index_bases[:, None] + set_indice].reshape(num_graphs, -1)
    ff_in = jnp.concatenate(
        [jnp.full((num_graphs, 1), timestamp, jnp.float32), merged], axis=1)
    h = ff_in @ params["ff_w1"].T + params["ff_b1"]
    h = jnp.where(h > 0, h, negative_slope * h)
    return h @ params["ff_w2"].T + params["ff_b2"]


# ----------------------------------------------------------------------------
# Demo
# ----------------------------------------------------------------------------
if __name__ == "__main__":
    in_features = 16
    hidden_features = 32
    num_layers = 2          # layer 0: heads=4, layer 1 (last): heads=1
    time_dim = 32           # time-encoder dimension
    set_indice_length = 3
    negative_slope = 0.2
    num_graphs = 2
    nodes_per_graph = 5

    key = jax.random.PRNGKey(0)
    kp, kx, kt = jax.random.split(key, 3)
    params, configs = init_tatt_params(
        kp, in_features=in_features, hidden_features=hidden_features,
        num_layers=num_layers, time_dim=time_dim,
        set_indice_length=set_indice_length)

    n_nodes = num_graphs * nodes_per_graph
    x = jax.random.normal(kx, (n_nodes, in_features), jnp.float32)

    # two small ring graphs, bidirectional edges
    src_list, dst_list = [], []
    for g in range(num_graphs):
        base = g * nodes_per_graph
        for i in range(nodes_per_graph):
            j = (i + 1) % nodes_per_graph
            src_list += [base + i, base + j]
            dst_list += [base + j, base + i]
    edge_index = jnp.array([src_list, dst_list], dtype=jnp.int32)   # (2, E)
    num_edges = edge_index.shape[1]
    timestamps = jax.random.uniform(kt, (num_edges,), jnp.float32, 0.0, 10.0)
    batch_idx = jnp.repeat(jnp.arange(num_graphs, dtype=jnp.int32), nodes_per_graph)
    set_indice = jnp.array([[0, 1, 2]] * num_graphs, dtype=jnp.int32)
    timestamp = 3.5

    ref = _reference_forward(params, configs, x, edge_index, timestamps, batch_idx,
                             set_indice, num_graphs, timestamp,
                             negative_slope=negative_slope)

    # 1) f32 matmul path: tight check against the PyTorch-order reference.
    out_f32 = tatt_forward(params, configs, x, edge_index, timestamps, batch_idx,
                           set_indice, num_graphs, timestamp,
                           negative_slope=negative_slope,
                           matmul_dtype=jnp.float32)
    jax.block_until_ready(out_f32)
    np.testing.assert_allclose(np.asarray(out_f32), np.asarray(ref),
                               rtol=1e-3, atol=1e-3)

    # 2) bf16-operand / f32-accumulation performance path (per perf feedback);
    #    looser tolerance accounts for bf16 operand rounding through two layers.
    out_bf16 = tatt_forward(params, configs, x, edge_index, timestamps, batch_idx,
                            set_indice, num_graphs, timestamp,
                            negative_slope=negative_slope,
                            matmul_dtype=jnp.bfloat16)
    jax.block_until_ready(out_bf16)
    np.testing.assert_allclose(np.asarray(out_bf16), np.asarray(ref),
                               rtol=5e-2, atol=5e-2)

    assert out_f32.shape == (num_graphs, set_indice_length)
    assert out_bf16.shape == (num_graphs, set_indice_length)
    print("KERNEL_OK")
</pallas_src>

<mosaic_0001>
module attributes {stable_mosaic.version = 11 : i64} {
  func.func @_node_proj_kernel(%arg0: i32, %arg1: memref<16x16xf32, #tpu.memory_space<vmem>>, %arg2: memref<16x128xf32, #tpu.memory_space<vmem>>, %arg3: memref<128x4xf32, #tpu.memory_space<vmem>>, %arg4: memref<128x4xf32, #tpu.memory_space<vmem>>, %arg5: memref<16x128xf32, #tpu.memory_space<vmem>>, %arg6: memref<16x4xf32, #tpu.memory_space<vmem>>, %arg7: memref<16x4xf32, #tpu.memory_space<vmem>>) attributes {dimension_semantics = [#tpu.dimension_semantics<parallel>], iteration_bounds = array<i64: 1>, scalar_prefetch = 0 : i64, scratch_operands = 0 : i64, tpu.core_type = #tpu.core_type<tc>, window_params = [{transform_indices = @transform_0, window_bounds = array<i64: 16, 16>}, {pipeline_mode = #tpu.pipeline_mode<synchronous>, transform_indices = @transform_1, window_bounds = array<i64: 16, 128>}, {pipeline_mode = #tpu.pipeline_mode<synchronous>, transform_indices = @transform_2, window_bounds = array<i64: 128, 4>}, {pipeline_mode = #tpu.pipeline_mode<synchronous>, transform_indices = @transform_3, window_bounds = array<i64: 128, 4>}, {transform_indices = @transform_4, window_bounds = array<i64: 16, 128>}, {transform_indices = @transform_5, window_bounds = array<i64: 16, 4>}, {transform_indices = @transform_6, window_bounds = array<i64: 16, 4>}]} {
    %c0 = arith.constant 0 : index
    %c0_0 = arith.constant 0 : index
    %0 = vector.load %arg1[%c0, %c0_0] : memref<16x16xf32, #tpu.memory_space<vmem>>, vector<16x16xf32>
    %c0_1 = arith.constant 0 : index
    %c0_2 = arith.constant 0 : index
    %1 = vector.load %arg2[%c0_1, %c0_2] : memref<16x128xf32, #tpu.memory_space<vmem>>, vector<16x128xf32>
    %cst = arith.constant dense<0.000000e+00> : vector<16x128xf32>
    %2 = tpu.matmul %0, %1, %cst {dimension_numbers = #tpu.dot_dimension_numbers<[1], [0], [0], [1], [0, 0, 1, 1], [], []>} : vector<16x16xf32>, vector<16x128xf32>, vector<16x128xf32> -> vector<16x128xf32>
    %c0_3 = arith.constant 0 : index
    %c0_4 = arith.constant 0 : index
    %3 = vector.load %arg5[%c0_3, %c0_4] : memref<16x128xf32, #tpu.memory_space<vmem>>, vector<16x128xf32>
    tpu.vector_store %arg5[%c0_3, %c0_4], %2 {strides = array<i32>} : memref<16x128xf32, #tpu.memory_space<vmem>>, vector<16x128xf32>,
    %c0_5 = arith.constant 0 : index
    %c0_6 = arith.constant 0 : index
    %4 = vector.load %arg3[%c0_5, %c0_6] : memref<128x4xf32, #tpu.memory_space<vmem>>, vector<128x4xf32>
    %cst_7 = arith.constant dense<0.000000e+00> : vector<16x4xf32>
    %5 = tpu.matmul %2, %4, %cst_7 {dimension_numbers = #tpu.dot_dimension_numbers<[1], [0], [0], [1], [0, 0, 1, 1], [], []>} : vector<16x128xf32>, vector<128x4xf32>, vector<16x4xf32> -> vector<16x4xf32>
    %c0_8 = arith.constant 0 : index
    %c0_9 = arith.constant 0 : index
    %6 = vector.load %arg6[%c0_8, %c0_9] : memref<16x4xf32, #tpu.memory_space<vmem>>, vector<16x4xf32>
    tpu.vector_store %arg6[%c0_8, %c0_9], %5 {strides = array<i32>} : memref<16x4xf32, #tpu.memory_space<vmem>>, vector<16x4xf32>,
    %c0_10 = arith.constant 0 : index
    %c0_11 = arith.constant 0 : index
    %7 = vector.load %arg4[%c0_10, %c0_11] : memref<128x4xf32, #tpu.memory_space<vmem>>, vector<128x4xf32>
    %cst_12 = arith.constant dense<0.000000e+00> : vector<16x4xf32>
    %8 = tpu.matmul %2, %7, %cst_12 {dimension_numbers = #tpu.dot_dimension_numbers<[1], [0], [0], [1], [0, 0, 1, 1], [], []>} : vector<16x128xf32>, vector<128x4xf32>, vector<16x4xf32> -> vector<16x4xf32>
    %c0_13 = arith.constant 0 : index
    %c0_14 = arith.constant 0 : index
    %9 = vector.load %arg7[%c0_13, %c0_14] : memref<16x4xf32, #tpu.memory_space<vmem>>, vector<16x4xf32>
    tpu.vector_store %arg7[%c0_13, %c0_14], %8 {strides = array<i32>} : memref<16x4xf32, #tpu.memory_space<vmem>>, vector<16x4xf32>,
    return
  }
  func.func @transform_0(%arg0: i32) -> (i32, i32) {
    %c0_i32 = arith.constant 0 : i32
    %c0_i32_0 = arith.constant 0 : i32
    return %arg0, %c0_i32 : i32, i32
  }
  func.func @transform_1(%arg0: i32) -> (i32, i32) {
    %c0_i32 = arith.constant 0 : i32
    %c0_i32_0 = arith.constant 0 : i32
    %c0_i32_1 = arith.constant 0 : i32
    return %c0_i32, %c0_i32_0 : i32, i32
  }
  func.func @transform_2(%arg0: i32) -> (i32, i32) {
    %c0_i32 = arith.constant 0 : i32
    %c0_i32_0 = arith.constant 0 : i32
    %c0_i32_1 = arith.constant 0 : i32
    return %c0_i32, %c0_i32_0 : i32, i32
  }
  func.func @transform_3(%arg0: i32) -> (i32, i32) {
    %c0_i32 = arith.constant 0 : i32
    %c0_i32_0 = arith.constant 0 : i32
    %c0_i32_1 = arith.constant 0 : i32
    return %c0_i32, %c0_i32_0 : i32, i32
  }
  func.func @transform_4(%arg0: i32) -> (i32, i32) {
    %c0_i32 = arith.constant 0 : i32
    %c0_i32_0 = arith.constant 0 : i32
    return %arg0, %c0_i32 : i32, i32
  }
  func.func @transform_5(%arg0: i32) -> (i32, i32) {
    %c0_i32 = arith.constant 0 : i32
    %c0_i32_0 = arith.constant 0 : i32
    return %arg0, %c0_i32 : i32, i32
  }
  func.func @transform_6(%arg0: i32) -> (i32, i32) {
    %c0_i32 = arith.constant 0 : i32
    %c0_i32_0 = arith.constant 0 : i32
    return %arg0, %c0_i32 : i32, i32
  }
}

</mosaic_0001>

<llo_original>
// kernel: tpu_custom_call.1
$region0: #{tpu_custom_call.1}
  #allocation0 [shape = 'u32[]', space=smem, size = 0x4, offset = 0x4, fixed_abs, tag = 'smem constant byte address 0x4 - core index']
  #allocation1 [shape = 'u32[144,128]{1,0:T(1,128)}', space=vmem, size = 0x12000, scoped, tag = 'internal scratch']
  %s0 = inlined_call_operand.vmem [shape: f32[16,16], index: 0, kind: input, shape index: {}]
  %s1 = inlined_call_operand.vmem [shape: f32[16,128], index: 1, kind: input, shape index: {}]
  %s2 = inlined_call_operand.vmem [shape: f32[128,4], index: 2, kind: input, shape index: {}]
  %s3 = inlined_call_operand.vmem [shape: f32[128,4], index: 3, kind: input, shape index: {}]
  %s4 = inlined_call_operand.hbm [shape: f32[16,128], index: 4, kind: output, shape index: {0}]
  %s5 = inlined_call_operand.vmem [shape: f32[16,4], index: 5, kind: output, shape index: {1}]
  %s6 = inlined_call_operand.vmem [shape: f32[16,4], index: 6, kind: output, shape index: {2}]
  %7 = xla_tuple %s4, %s5, %s6
  %s8 = sld [smem:[#allocation0]]
  $region42: #{tpu_custom_call.1} parent=0
    _
  %s10 = ssub.s32 1, %s8
  %s11 = scalar_select 0, %s10, %s8
  $region1: #{tpu_custom_call.1} parent=0
    #allocation2 [shape = 'u8[8192]{0}', space=vmem, size = 0x2000, scoped, tag = 'output window, operand 0, single buffered']
    #allocation3 [shape = 's32[1]{0}', space=sflag, size = 0x4, scoped, tag = 'scoped memory for tpu_custom_call.1']
    %12 = vsyncpa [#allocation3], 0
    // Predicated region
    $region2: #{tpu_custom_call.1} parent=1 // pred_check
      _
    $region3: #{tpu_custom_call.1} parent=1 // pred_check_branch
      %14 = sbr.rel (0) target = $region5
    $region4: #{tpu_custom_call.1} parent=1 // pred_region
      _
    $region5: #{tpu_custom_call.1} parent=1 // pred_fallthru
      _
    // Predicated region
    $region6: #{tpu_custom_call.1} parent=1 // pred_check
      _
    $region7: #{tpu_custom_call.1} parent=1 // pred_check_branch
      %16 = sbr.rel (0) target = $region9
    $region8: #{tpu_custom_call.1} parent=1 // pred_region
      _
    $region9: #{tpu_custom_call.1} parent=1 // pred_fallthru
      _
    // Predicated region
    $region10: #{tpu_custom_call.1} parent=1 // pred_check
      _
    $region11: #{tpu_custom_call.1} parent=1 // pred_check_branch
      %18 = sbr.rel (0) target = $region13
    $region12: #{tpu_custom_call.1} parent=1 // pred_region
      _
    $region13: #{tpu_custom_call.1} parent=1 // pred_fallthru
      _
    // Predicated region
    $region14: #{tpu_custom_call.1} parent=1 // pred_check
      _
    $region15: #{tpu_custom_call.1} parent=1 // pred_check_branch
      %20 = sbr.rel (0) target = $region17
    $region16: #{tpu_custom_call.1} parent=1 // pred_region
      _
    $region17: #{tpu_custom_call.1} parent=1 // pred_fallthru
      _
    %v21 = vld [vmem:[%s0] sm:$0xff]
    %v22 = vld [vmem:[%s0 + $0x8] sm:$0xff]
    %v23 = vld [vmem:[%s1] sm:$0xff]
    %v24 = vld [vmem:[%s1 + $0x8] sm:$0xff]
    %vm25 = vcmask 130048
    %v27 = vsel %vm25, %v21, 0
    %v30 = vsel %vm25, %v22, 0
    %32 = vmatprep.subr.mxu0 0.0
    %33 = vmatpush1.msra.mxu0 0.0
    %34 = vmatprep.subr.mxu0 0.0
    %35 = vmatpush1.msra.mxu0 0.0
    %36 = vmatprep.subr.mxu0 0.0
    %37 = vmatpush1.msra.mxu0 0.0
    %38 = vmatprep.subr.mxu0 0.0
    %39 = vmatpush1.msra.mxu0 0.0
    %40 = vmatprep.subr.mxu0 0.0
    %41 = vmatpush1.msra.mxu0 0.0
    %42 = vmatprep.subr.mxu0 0.0
    %43 = vmatpush1.msra.mxu0 0.0
    %44 = vmatprep.subr.mxu0 0.0
    %45 = vmatpush1.msra.mxu0 0.0
    %46 = vmatprep.subr.mxu0 0.0
    %47 = vmatpush1.msra.mxu0 0.0
    %48 = vmatprep.subr.mxu0 0.0
    %49 = vmatpush1.msra.mxu0 0.0
    %50 = vmatprep.subr.mxu0 0.0
    %51 = vmatpush1.msra.mxu0 0.0
    %52 = vmatprep.subr.mxu0 0.0
    %53 = vmatpush1.msra.mxu0 0.0
    %54 = vmatprep.subr.mxu0 0.0
    %55 = vmatpush1.msra.mxu0 0.0
    %56 = vmatprep.subr.mxu0 0.0
    %57 = vmatpush1.msra.mxu0 0.0
    %58 = vmatprep.subr.mxu0 0.0
    %59 = vmatpush1.msra.mxu0 0.0
    %60 = vmatprep.subr.mxu0 0.0
    %61 = vmatpush1.msra.mxu0 %v24
    %62 = vmatprep.subr.mxu0 0.0
    %63 = vmatpush1.msra.mxu0 %v23
    %64 = vmatprep.subr.mxu0 0.0
    %65 = vmatpush2.msra.mxu0 0.0
    %66 = vmatprep.subr.mxu0 0.0
    %67 = vmatpush2.msra.mxu0 0.0
    %68 = vmatprep.subr.mxu0 0.0
    %69 = vmatpush2.msra.mxu0 0.0
    %70 = vmatprep.subr.mxu0 0.0
    %71 = vmatpush2.msra.mxu0 0.0
    %72 = vmatprep.subr.mxu0 0.0
    %73 = vmatpush2.msra.mxu0 0.0
    %74 = vmatprep.subr.mxu0 0.0
    %75 = vmatpush2.msra.mxu0 0.0
    %76 = vmatprep.subr.mxu0 0.0
    %77 = vmatpush2.msra.mxu0 0.0
    %78 = vmatprep.subr.mxu0 0.0
    %79 = vmatpush2.msra.mxu0 0.0
    %80 = vmatprep.subr.mxu0 0.0
    %81 = vmatpush2.msra.mxu0 0.0
    %82 = vmatprep.subr.mxu0 0.0
    %83 = vmatpush2.msra.mxu0 0.0
    %84 = vmatprep.subr.mxu0 0.0
    %85 = vmatpush2.msra.mxu0 0.0
    %86 = vmatprep.subr.mxu0 0.0
    %87 = vmatpush2.msra.mxu0 0.0
    %88 = vmatprep.subr.mxu0 0.0
    %89 = vmatpush2.msra.mxu0 0.0
    %90 = vmatprep.subr.mxu0 0.0
    %91 = vmatpush2.msra.mxu0 0.0
    %92 = vmatprep.subr.mxu0 0.0
    %93 = vmatpush2.msra.mxu0 0.0
    %94 = vmatprep.subr.mxu0 0.0
    %95 = vmatpush2.msra.mxu0 0.0
    %96 = vmatprep.mubr.f32.mxu0 0.0
    %97 = vmatmul.mubr.f32.gmra.mxu0 %v27
    %v98 = vpop.f32.mrf.mxu0
    %v99 = vadd.f32 0.0, %v98
    %v100 = vpop.f32.mrf.mxu0
    %101 = vmatprep.mubr.f32.mxu0 0.0
    %102 = vmatmul.mubr.f32.gmra.mxu0 %v30
    %v103 = vpop.f32.mrf.mxu0
    %v104 = vadd.f32 0.0, %v103
    %v105 = vpop.f32.mrf.mxu0
    %106 = vdwg.mxu0
    %107 = vst [vmem:[#allocation2] sm:$0xff] %v99
    %108 = vst [vmem:[#allocation2 + $0x8] sm:$0xff] %v104
    %v109 = vld [vmem:[%s2] sm:$0xff]
    %v110 = vld [vmem:[%s2 + $0x8] sm:$0xff]
    %v111 = vld [vmem:[%s2 + $0x10] sm:$0xff]
    %v112 = vld [vmem:[%s2 + $0x18] sm:$0xff]
    %v113 = vld [vmem:[%s2 + $0x20] sm:$0xff]
    %v114 = vld [vmem:[%s2 + $0x28] sm:$0xff]
    %v115 = vld [vmem:[%s2 + $0x30] sm:$0xff]
    %v116 = vld [vmem:[%s2 + $0x38] sm:$0xff]
    %v117 = vld [vmem:[%s2 + $0x40] sm:$0xff]
    %v118 = vld [vmem:[%s2 + $0x48] sm:$0xff]
    %v119 = vld [vmem:[%s2 + $0x50] sm:$0xff]
    %v120 = vld [vmem:[%s2 + $0x58] sm:$0xff]
    %v121 = vld [vmem:[%s2 + $0x60] sm:$0xff]
    %v122 = vld [vmem:[%s2 + $0x68] sm:$0xff]
    %v123 = vld [vmem:[%s2 + $0x70] sm:$0xff]
    %v124 = vld [vmem:[%s2 + $0x78] sm:$0xff]
    %125 = vmatprep.subr.mxu0 0.0
    %126 = vmatpush1.msra.mxu0 %v124
    %127 = vmatprep.subr.mxu0 0.0
    %128 = vmatpush1.msra.mxu0 %v123
    %129 = vmatprep.subr.mxu0 0.0
    %130 = vmatpush1.msra.mxu0 %v122
    %131 = vmatprep.subr.mxu0 0.0
    %132 = vmatpush1.msra.mxu0 %v121
    %133 = vmatprep.subr.mxu0 0.0
    %134 = vmatpush1.msra.mxu0 %v120
    %135 = vmatprep.subr.mxu0 0.0
    %136 = vmatpush1.msra.mxu0 %v119
    %137 = vmatprep.subr.mxu0 0.0
    %138 = vmatpush1.msra.mxu0 %v118
    %139 = vmatprep.subr.mxu0 0.0
    %140 = vmatpush1.msra.mxu0 %v117
    %141 = vmatprep.subr.mxu0 0.0
    %142 = vmatpush1.msra.mxu0 %v116
    %143 = vmatprep.subr.mxu0 0.0
    %144 = vmatpush1.msra.mxu0 %v115
    %145 = vmatprep.subr.mxu0 0.0
    %146 = vmatpush1.msra.mxu0 %v114
    %147 = vmatprep.subr.mxu0 0.0
    %148 = vmatpush1.msra.mxu0 %v113
    %149 = vmatprep.subr.mxu0 0.0
    %150 = vmatpush1.msra.mxu0 %v112
    %151 = vmatprep.subr.mxu0 0.0
    %152 = vmatpush1.msra.mxu0 %v111
    %153 = vmatprep.subr.mxu0 0.0
    %154 = vmatpush1.msra.mxu0 %v110
    %155 = vmatprep.subr.mxu0 0.0
    %156 = vmatpush1.msra.mxu0 %v109
    %157 = vmatprep.subr.mxu0 0.0
    %158 = vmatpush2.msra.mxu0 0.0
    %159 = vmatprep.subr.mxu0 0.0
    %160 = vmatpush2.msra.mxu0 0.0
    %161 = vmatprep.subr.mxu0 0.0
    %162 = vmatpush2.msra.mxu0 0.0
    %163 = vmatprep.subr.mxu0 0.0
    %164 = vmatpush2.msra.mxu0 0.0
    %165 = vmatprep.subr.mxu0 0.0
    %166 = vmatpush2.msra.mxu0 0.0
    %167 = vmatprep.subr.mxu0 0.0
    %168 = vmatpush2.msra.mxu0 0.0
    %169 = vmatprep.subr.mxu0 0.0
    %170 = vmatpush2.msra.mxu0 0.0
    %171 = vmatprep.subr.mxu0 0.0
    %172 = vmatpush2.msra.mxu0 0.0
    %173 = vmatprep.subr.mxu0 0.0
    %174 = vmatpush2.msra.mxu0 0.0
    %175 = vmatprep.subr.mxu0 0.0
    %176 = vmatpush2.msra.mxu0 0.0
    %177 = vmatprep.subr.mxu0 0.0
    %178 = vmatpush2.msra.mxu0 0.0
    %179 = vmatprep.subr.mxu0 0.0
    %180 = vmatpush2.msra.mxu0 0.0
    %181 = vmatprep.subr.mxu0 0.0
    %182 = vmatpush2.msra.mxu0 0.0
    %183 = vmatprep.subr.mxu0 0.0
    %184 = vmatpush2.msra.mxu0 0.0
    %185 = vmatprep.subr.mxu0 0.0
    %186 = vmatpush2.msra.mxu0 0.0
    %187 = vmatprep.subr.mxu0 0.0
    %188 = vmatpush2.msra.mxu0 0.0
    %189 = vmatprep.mubr.f32.mxu0 0.0
    %190 = vmatmul.mubr.f32.gmra.mxu0 %v99
    %v191 = vpop.f32.mrf.mxu0
    %v192 = vadd.f32 0.0, %v191
    %v193 = vpop.f32.mrf.mxu0
    %194 = vmatprep.mubr.f32.mxu0 0.0
    %195 = vmatmul.mubr.f32.gmra.mxu0 %v104
    %v196 = vpop.f32.mrf.mxu0
    %v197 = vadd.f32 0.0, %v196
    %v198 = vpop.f32.mrf.mxu0
    %199 = vdwg.mxu0
    %vm200 = vcmask 31744
    %201 = vst.msk [vmem:[%s5] sm:$0xff] %vm200, %v192
    %202 = vst.msk [vmem:[%s5 + $0x8] sm:$0xff] %vm200, %v197
    %v203 = vld [vmem:[%s3] sm:$0xff]
    %v204 = vld [vmem:[%s3 + $0x8] sm:$0xff]
    %v205 = vld [vmem:[%s3 + $0x10] sm:$0xff]
    %v206 = vld [vmem:[%s3 + $0x18] sm:$0xff]
    %v207 = vld [vmem:[%s3 + $0x20] sm:$0xff]
    %v208 = vld [vmem:[%s3 + $0x28] sm:$0xff]
    %v209 = vld [vmem:[%s3 + $0x30] sm:$0xff]
    %v210 = vld [vmem:[%s3 + $0x38] sm:$0xff]
    %v211 = vld [vmem:[%s3 + $0x40] sm:$0xff]
    %v212 = vld [vmem:[%s3 + $0x48] sm:$0xff]
    %v213 = vld [vmem:[%s3 + $0x50] sm:$0xff]
    %v214 = vld [vmem:[%s3 + $0x58] sm:$0xff]
    %v215 = vld [vmem:[%s3 + $0x60] sm:$0xff]
    %v216 = vld [vmem:[%s3 + $0x68] sm:$0xff]
    %v217 = vld [vmem:[%s3 + $0x70] sm:$0xff]
    %v218 = vld [vmem:[%s3 + $0x78] sm:$0xff]
    %219 = vmatprep.subr.mxu0 0.0
    %220 = vmatpush1.msra.mxu0 %v218
    %221 = vmatprep.subr.mxu0 0.0
    %222 = vmatpush1.msra.mxu0 %v217
    %223 = vmatprep.subr.mxu0 0.0
    %224 = vmatpush1.msra.mxu0 %v216
    %225 = vmatprep.subr.mxu0 0.0
    %226 = vmatpush1.msra.mxu0 %v215
    %227 = vmatprep.subr.mxu0 0.0
    %228 = vmatpush1.msra.mxu0 %v214
    %229 = vmatprep.subr.mxu0 0.0
    %230 = vmatpush1.msra.mxu0 %v213
    %231 = vmatprep.subr.mxu0 0.0
    %232 = vmatpush1.msra.mxu0 %v212
    %233 = vmatprep.subr.mxu0 0.0
    %234 = vmatpush1.msra.mxu0 %v211
    %235 = vmatprep.subr.mxu0 0.0
    %236 = vmatpush1.msra.mxu0 %v210
    %237 = vmatprep.subr.mxu0 0.0
    %238 = vmatpush1.msra.mxu0 %v209
    %239 = vmatprep.subr.mxu0 0.0
    %240 = vmatpush1.msra.mxu0 %v208
    %241 = vmatprep.subr.mxu0 0.0
    %242 = vmatpush1.msra.mxu0 %v207
    %243 = vmatprep.subr.mxu0 0.0
    %244 = vmatpush1.msra.mxu0 %v206
    %245 = vmatprep.subr.mxu0 0.0
    %246 = vmatpush1.msra.mxu0 %v205
    %247 = vmatprep.subr.mxu0 0.0
    %248 = vmatpush1.msra.mxu0 %v204
    %249 = vmatprep.subr.mxu0 0.0
    %250 = vmatpush1.msra.mxu0 %v203
    %251 = vmatprep.subr.mxu0 0.0
    %252 = vmatpush2.msra.mxu0 0.0
    %253 = vmatprep.subr.mxu0 0.0
    %254 = vmatpush2.msra.mxu0 0.0
    %255 = vmatprep.subr.mxu0 0.0
    %256 = vmatpush2.msra.mxu0 0.0
    %257 = vmatprep.subr.mxu0 0.0
    %258 = vmatpush2.msra.mxu0 0.0
    %259 = vmatprep.subr.mxu0 0.0
    %260 = vmatpush2.msra.mxu0 0.0
    %261 = vmatprep.subr.mxu0 0.0
    %262 = vmatpush2.msra.mxu0 0.0
    %263 = vmatprep.subr.mxu0 0.0
    %264 = vmatpush2.msra.mxu0 0.0
    %265 = vmatprep.subr.mxu0 0.0
    %266 = vmatpush2.msra.mxu0 0.0
    %267 = vmatprep.subr.mxu0 0.0
    %268 = vmatpush2.msra.mxu0 0.0
    %269 = vmatprep.subr.mxu0 0.0
    %270 = vmatpush2.msra.mxu0 0.0
    %271 = vmatprep.subr.mxu0 0.0
    %272 = vmatpush2.msra.mxu0 0.0
    %273 = vmatprep.subr.mxu0 0.0
    %274 = vmatpush2.msra.mxu0 0.0
    %275 = vmatprep.subr.mxu0 0.0
    %276 = vmatpush2.msra.mxu0 0.0
    %277 = vmatprep.subr.mxu0 0.0
    %278 = vmatpush2.msra.mxu0 0.0
    %279 = vmatprep.subr.mxu0 0.0
    %280 = vmatpush2.msra.mxu0 0.0
    %281 = vmatprep.subr.mxu0 0.0
    %282 = vmatpush2.msra.mxu0 0.0
    %283 = vmatprep.mubr.f32.mxu0 0.0
    %284 = vmatmul.mubr.f32.gmra.mxu0 %v99
    %v285 = vpop.f32.mrf.mxu0
    %v286 = vadd.f32 0.0, %v285
    %v287 = vpop.f32.mrf.mxu0
    %288 = vmatprep.mubr.f32.mxu0 0.0
    %289 = vmatmul.mubr.f32.gmra.mxu0 %v104
    %v290 = vpop.f32.mrf.mxu0
    %v291 = vadd.f32 0.0, %v290
    %v292 = vpop.f32.mrf.mxu0
    %293 = vdwg.mxu0
    %294 = vst.msk [vmem:[%s6] sm:$0xff] %vm200, %v286
    %295 = vst.msk [vmem:[%s6 + $0x8] sm:$0xff] %vm200, %v291
    // Predicated region
    $region18: #{tpu_custom_call.1} parent=1 // pred_check
      _
    $region19: #{tpu_custom_call.1} parent=1 // pred_check_branch
      %297 = sbr.rel (0) target = $region21
    $region20: #{tpu_custom_call.1} parent=1 // pred_region
      %s299 = ssub.s32 256, 256
      %300 = vsyncadd [#allocation3], %s299
      %s301 = sshll.u32 [#allocation2], 4
      %s302 = int_to_ptr.vmem [resolvable:$true] %s301
      %307 = dma.vmem_to_hbm [thread:$0]  %s302, 256, %s4, [#allocation3], 128, 128, 8
    $region21: #{tpu_custom_call.1} parent=1 // pred_fallthru
      _
    // Predicated region
    $region22: #{tpu_custom_call.1} parent=1 // pred_check
      _
    $region23: #{tpu_custom_call.1} parent=1 // pred_check_branch
      %309 = sbr.rel (0) target = $region25
    $region24: #{tpu_custom_call.1} parent=1 // pred_region
      _
    $region25: #{tpu_custom_call.1} parent=1 // pred_fallthru
      _
    // Predicated region
    $region26: #{tpu_custom_call.1} parent=1 // pred_check
      _
    $region27: #{tpu_custom_call.1} parent=1 // pred_check_branch
      %311 = sbr.rel (0) target = $region29
    $region28: #{tpu_custom_call.1} parent=1 // pred_region
      _
    $region29: #{tpu_custom_call.1} parent=1 // pred_fallthru
      _
    // Predicated region
    $region30: #{tpu_custom_call.1} parent=1 // pred_check
      _
    $region31: #{tpu_custom_call.1} parent=1 // pred_check_branch
      %313 = sbr.rel (0) target = $region33
    $region32: #{tpu_custom_call.1} parent=1 // pred_region
      %314 = dma.done [#allocation3], 256
    $region33: #{tpu_custom_call.1} parent=1 // pred_fallthru
      _
    // Predicated region
    $region34: #{tpu_custom_call.1} parent=1 // pred_check
      _
    $region35: #{tpu_custom_call.1} parent=1 // pred_check_branch
      %316 = sbr.rel (0) target = $region37
    $region36: #{tpu_custom_call.1} parent=1 // pred_region
      _
    $region37: #{tpu_custom_call.1} parent=1 // pred_fallthru
      _
    // Predicated region
    $region38: #{tpu_custom_call.1} parent=1 // pred_check
      _
    $region39: #{tpu_custom_call.1} parent=1 // pred_check_branch
      %318 = sbr.rel (0) target = $region41
    $region40: #{tpu_custom_call.1} parent=1 // pred_region
      _
    $region41: #{tpu_custom_call.1} parent=1 // pred_fallthru
      _
    %319 = vsyncpa [#allocation3], 1

</llo_original>
